<compile_context>
chip_gen: v6e
topology: v6e:2x2x1
jax: 0.10.0
libtpu: 0.0.40
codegen_flags: <defaults>
</compile_context>

<pallas_src>
import functools

import jax
import jax.numpy as jnp
import numpy as np
from jax.experimental import pallas as pl
from jax.experimental.pallas import tpu as pltpu

BN_EPS = 1e-5


def _fused_kernel(x_ref, w1_ref, mask_ref, w2_ref, b2_ref, o_ref, *, W):
    """One image per grid step.

    x_ref   : (1, Cp, HW)   padded input; channel C is a constant-1 bias channel
    w1_ref  : (K1, 9*Cp)    bf16 folded (BN + depthwise + 1x1#1 + bias) weights
    mask_ref: (9, HW)       {0,1} f32 boundary masks (per tap, spatial only)
    w2_ref  : (Kp, K1)      block-diagonal stack of the three 1x1#2 weights
    b2_ref  : (Kp, 1)       stacked 1x1#2 biases (padded rows are 0)
    o_ref   : (1, Kp, HW)   fused output slab (lane-dense, 8-row aligned)
    """
    x = x_ref[0]                                   # (Cp, HW) f32
    HW = x.shape[1]
    mask = mask_ref[...]                           # (9, HW) f32

    # Build the stacked tap matrix: tap_t[c, p] = x[c, p + off_t], zeroed where
    # the 3x3 window falls outside the image (mask is precomputed; it also
    # kills the wrap-around from the roll and any cross-row leakage).
    taps = []
    t = 0
    for dy in range(3):
        for dx in range(3):
            off = (dy - 1) * W + (dx - 1)
            if off == 0:
                tap = x                            # center tap: no roll, mask == 1
            else:
                tap = pltpu.roll(x, shift=(-off) % HW, axis=1)
                tap = tap * mask[t:t + 1]          # (1,HW) broadcast over channels
            taps.append(tap)
            t += 1
    stacked = jnp.concatenate(taps, axis=0)        # (9*Cp, HW) f32, tile-aligned
    stacked = stacked.astype(jnp.bfloat16)

    # Stage 1: single contraction-(9*Cp) matmul (bias folded via the constant-1
    # channel of the center tap), then ReLU.
    h = jnp.dot(w1_ref[...], stacked, preferred_element_type=jnp.float32)  # (K1,HW)
    h = jnp.maximum(h, 0.0)

    # Stage 2: block-diagonal second 1x1 conv for all heads at once (f32).
    out = jnp.dot(w2_ref[...], h, preferred_element_type=jnp.float32) + b2_ref[...]
    o_ref[0] = out.astype(o_ref.dtype)             # full (Kp, HW) unmasked store


def _fused_pallas(x_pad, w1_all, mask, w2_all, b2_all, W):
    N, Cp, HW = x_pad.shape
    K1, KC = w1_all.shape
    Kp = w2_all.shape[0]

    kernel = functools.partial(_fused_kernel, W=W)
    flops = 2 * N * HW * (KC * K1 + K1 * Kp)
    bytes_accessed = (4 * (x_pad.size + N * Kp * HW + mask.size
                           + w2_all.size + b2_all.size)
                      + 2 * w1_all.size)

    return pl.pallas_call(
        kernel,
        out_shape=jax.ShapeDtypeStruct((N, Kp, HW), jnp.float32),
        grid_spec=pltpu.PrefetchScalarGridSpec(
            num_scalar_prefetch=0,
            grid=(N,),
            in_specs=[
                pl.BlockSpec((1, Cp, HW), lambda n: (n, 0, 0)),   # x (read once)
                pl.BlockSpec((K1, KC), lambda n: (0, 0)),         # folded stage-1 W
                pl.BlockSpec((9, HW), lambda n: (0, 0)),          # boundary masks
                pl.BlockSpec((Kp, K1), lambda n: (0, 0)),         # block-diag stage-2 W
                pl.BlockSpec((Kp, 1), lambda n: (0, 0)),          # stage-2 bias
            ],
            out_specs=pl.BlockSpec((1, Kp, HW), lambda n: (n, 0, 0)),
        ),
        compiler_params=pltpu.CompilerParams(dimension_semantics=("parallel",)),
        cost_estimate=pl.CostEstimate(flops=flops, transcendentals=0,
                                      bytes_accessed=bytes_accessed),
    )(x_pad, w1_all, mask, w2_all, b2_all)


def map_heatmap_forward(x_nchw, params):
    """Forward of MapHeatmap. x_nchw: (N, C, H, W). Returns dict of NCHW outputs."""
    head_names = list(params.keys())
    N, C, H, W = x_nchw.shape
    HW = H * W
    HC = params[head_names[0]]["w1"].shape[1]
    Ks = [params[h]["w2"].shape[1] for h in head_names]
    Ktot = sum(Ks)
    NH = len(head_names)

    # Channel padding: Cp = round_up(C + 1, 8).  Channel C is a constant-1
    # bias channel; remaining pad channels are 0 (their weights are 0 too).
    Cp = ((C + 1 + 7) // 8) * 8
    Kp = max(8, ((Ktot + 7) // 8) * 8)              # pad stacked output rows to 8

    # ---- trace-time folding & stacking (exact algebra, done once) ----
    w1_parts = []
    w2_all = jnp.zeros((Kp, NH * HC), jnp.float32)
    b2_all = jnp.zeros((Kp, 1), jnp.float32)
    ko = 0
    for i, head in enumerate(head_names):
        p = params[head]
        s = p["gamma"][0] * jax.lax.rsqrt(p["var"][0] + BN_EPS)            # (C,)
        dwf = p["dw_w"].reshape(9, C) * s[None, :]                         # (9,C) BN-scaled dw
        bias_f = s * (p["dw_b"][0] - p["mean"][0]) + p["beta"][0]          # (C,)
        w1t = p["w1"].T                                                    # (HC, C)
        W1_i = jnp.zeros((HC, 9, Cp), jnp.float32)
        W1_i = W1_i.at[:, :, :C].set(w1t[:, None, :] * dwf[None, :, :])    # folded dw+1x1
        W1_i = W1_i.at[:, 4, C].set(w1t @ bias_f)                          # bias via 1-channel
        w1_parts.append(W1_i.reshape(HC, 9 * Cp))
        w2_all = w2_all.at[ko:ko + Ks[i], i * HC:(i + 1) * HC].set(p["w2"].T)
        b2_all = b2_all.at[ko:ko + Ks[i], 0].set(p["b2"][0])
        ko += Ks[i]
    w1_all = jnp.concatenate(w1_parts, axis=0).astype(jnp.bfloat16)        # (K1, 9*Cp)

    # Precomputed {0,1} boundary masks, spatial-index only (shared by channels).
    p_np = np.arange(HW)
    row_np, col_np = p_np // W, p_np % W
    mask_np = np.zeros((9, HW), np.float32)
    t = 0
    for dy in range(3):
        for dx in range(3):
            ok = ((row_np + dy - 1 >= 0) & (row_np + dy - 1 <= H - 1) &
                  (col_np + dx - 1 >= 0) & (col_np + dx - 1 <= W - 1))
            mask_np[t] = ok.astype(np.float32)
            t += 1
    mask = jnp.asarray(mask_np)

    # NCHW -> (N, C, H*W): free reshape, then channel pad (+ bias channel).
    x_flat = jnp.reshape(x_nchw, (N, C, HW)).astype(jnp.float32)
    pad = jnp.concatenate(
        [jnp.ones((N, 1, HW), jnp.float32),
         jnp.zeros((N, Cp - C - 1, HW), jnp.float32)], axis=1)
    x_pad = jnp.concatenate([x_flat, pad], axis=1)                         # (N, Cp, HW)

    out_flat = _fused_pallas(x_pad, w1_all, mask, w2_all, b2_all, W)       # (N, Kp, HW)
    out = out_flat.reshape(N, Kp, H, W)                                    # free reshape

    res = {}
    ko = 0
    for i, head in enumerate(head_names):
        res[head] = out[:, ko:ko + Ks[i]]                                  # drops Kp padding
        ko += Ks[i]
    return res


def init_params(key, input_channels, heads, head_conv):
    params = {}
    for head, classes in heads.items():
        key, k0, k1, k2, k3, kg, kb, km, kv = jax.random.split(key, 9)
        C, HC, K = input_channels, head_conv, classes
        params[head] = {
            # depthwise conv: torch weight (C,1,3,3) stored here as (3,3,C)
            "dw_w": 0.1 * jax.random.normal(k0, (3, 3, C), jnp.float32),
            "dw_b": (0.05 * jax.random.normal(k3, (1, C), jnp.float32)
                     if "hm" in head else jnp.zeros((1, C), jnp.float32)),
            # BatchNorm2d (inference-mode running stats) — randomized to exercise folding
            "gamma": 1.0 + 0.1 * jax.random.normal(kg, (1, C), jnp.float32),
            "beta": 0.1 * jax.random.normal(kb, (1, C), jnp.float32),
            "mean": 0.1 * jax.random.normal(km, (1, C), jnp.float32),
            "var": 1.0 + 0.1 * jax.random.uniform(kv, (1, C), jnp.float32),
            # 1x1 convs: torch (HC,C,1,1) -> (C,HC);  (K,HC,1,1) -> (HC,K)
            "w1": 0.1 * jax.random.normal(k1, (C, HC), jnp.float32),
            "w2": 0.1 * jax.random.normal(k2, (HC, K), jnp.float32),
            "b2": (jnp.full((1, K), -2.19, jnp.float32)
                   if "hm" in head else jnp.zeros((1, K), jnp.float32)),
        }
    return params


def _ref_head(x_nchw, p):
    """Pure-JAX unfused f32 reference for one head (original op order, no folding)."""
    N, C, H, W = x_nchw.shape
    xp = jnp.pad(x_nchw, ((0, 0), (0, 0), (1, 1), (1, 1)))
    acc = jnp.zeros_like(x_nchw)
    for dy in range(3):
        for dx in range(3):
            acc = acc + xp[:, :, dy:dy + H, dx:dx + W] * p["dw_w"][dy, dx][None, :, None, None]
    y = acc + p["dw_b"][0][None, :, None, None]
    inv = jax.lax.rsqrt(p["var"][0] + BN_EPS)
    y = ((y - p["mean"][0][None, :, None, None]) * (inv * p["gamma"][0])[None, :, None, None]
         + p["beta"][0][None, :, None, None])
    h = jnp.maximum(jnp.einsum("nchw,cd->ndhw", y, p["w1"]), 0.0)
    return jnp.einsum("ndhw,dk->nkhw", h, p["w2"]) + p["b2"][0][None, :, None, None]


if __name__ == "__main__":
    N, C, H, W = 2, 4, 16, 16
    head_conv = 32
    heads = {"hm": 3, "wh": 2, "reg": 2}

    key = jax.random.PRNGKey(0)
    key, xkey = jax.random.split(key)
    x = jax.random.normal(xkey, (N, C, H, W), jnp.float32)
    params = init_params(key, C, heads, head_conv)

    fwd = jax.jit(map_heatmap_forward)
    out = fwd(x, params)
    jax.block_until_ready(out)

    # correctness check against the unfused pure-JAX f32 reference
    # (stage-1 matmul runs in bf16, hence the 2e-2 tolerance)
    for head in heads:
        ref = _ref_head(x, params[head])
        np.testing.assert_allclose(np.asarray(out[head]), np.asarray(ref),
                                   rtol=2e-2, atol=2e-2)
        assert out[head].shape == (N, heads[head], H, W)

    print("KERNEL_OK")
</pallas_src>

<mosaic_0001>
module attributes {stable_mosaic.version = 11 : i64} {
  func.func @_fused_kernel(%arg0: i32, %arg1: memref<1x8x256xf32, #tpu.memory_space<vmem>>, %arg2: memref<96x72xbf16, #tpu.memory_space<vmem>>, %arg3: memref<9x256xf32, #tpu.memory_space<vmem>>, %arg4: memref<8x96xf32, #tpu.memory_space<vmem>>, %arg5: memref<8x1xf32, #tpu.memory_space<vmem>>, %arg6: memref<1x8x256xf32, #tpu.memory_space<vmem>>) attributes {dimension_semantics = [#tpu.dimension_semantics<parallel>], iteration_bounds = array<i64: 2>, scalar_prefetch = 0 : i64, scratch_operands = 0 : i64, tpu.core_type = #tpu.core_type<tc>, window_params = [{transform_indices = @transform_0, window_bounds = array<i64: 1, 8, 256>}, {pipeline_mode = #tpu.pipeline_mode<synchronous>, transform_indices = @transform_1, window_bounds = array<i64: 96, 72>}, {pipeline_mode = #tpu.pipeline_mode<synchronous>, transform_indices = @transform_2, window_bounds = array<i64: 9, 256>}, {pipeline_mode = #tpu.pipeline_mode<synchronous>, transform_indices = @transform_3, window_bounds = array<i64: 8, 96>}, {pipeline_mode = #tpu.pipeline_mode<synchronous>, transform_indices = @transform_4, window_bounds = array<i64: 8, 1>}, {transform_indices = @transform_5, window_bounds = array<i64: 1, 8, 256>}]} {
    %c0 = arith.constant 0 : index
    %c0_0 = arith.constant 0 : index
    %c0_1 = arith.constant 0 : index
    %0 = vector.load %arg1[%c0, %c0_0, %c0_1] : memref<1x8x256xf32, #tpu.memory_space<vmem>>, vector<1x8x256xf32>
    %1 = vector.shape_cast %0 : vector<1x8x256xf32> to vector<8x256xf32>
    %c0_2 = arith.constant 0 : index
    %c0_3 = arith.constant 0 : index
    %2 = vector.load %arg3[%c0_2, %c0_3] : memref<9x256xf32, #tpu.memory_space<vmem>>, vector<9x256xf32>
    %c17_i32 = arith.constant 17 : i32
    %3 = tpu.dynamic_rotate %1 by %c17_i32 dim 1 : vector<8x256xf32>, i32 -> vector<8x256xf32>
    %4 = vector.extract_strided_slice %2 {offsets = [0, 0], sizes = [1, 256], strides = [1, 1]} : vector<9x256xf32> to vector<1x256xf32>
    %5 = vector.broadcast %4 : vector<1x256xf32> to vector<8x256xf32>
    %6 = arith.mulf %3, %5 : vector<8x256xf32>
    %c16_i32 = arith.constant 16 : i32
    %7 = tpu.dynamic_rotate %1 by %c16_i32 dim 1 : vector<8x256xf32>, i32 -> vector<8x256xf32>
    %8 = vector.extract_strided_slice %2 {offsets = [1, 0], sizes = [1, 256], strides = [1, 1]} : vector<9x256xf32> to vector<1x256xf32>
    %9 = vector.broadcast %8 : vector<1x256xf32> to vector<8x256xf32>
    %10 = arith.mulf %7, %9 : vector<8x256xf32>
    %c15_i32 = arith.constant 15 : i32
    %11 = tpu.dynamic_rotate %1 by %c15_i32 dim 1 : vector<8x256xf32>, i32 -> vector<8x256xf32>
    %12 = vector.extract_strided_slice %2 {offsets = [2, 0], sizes = [1, 256], strides = [1, 1]} : vector<9x256xf32> to vector<1x256xf32>
    %13 = vector.broadcast %12 : vector<1x256xf32> to vector<8x256xf32>
    %14 = arith.mulf %11, %13 : vector<8x256xf32>
    %c1_i32 = arith.constant 1 : i32
    %15 = tpu.dynamic_rotate %1 by %c1_i32 dim 1 : vector<8x256xf32>, i32 -> vector<8x256xf32>
    %16 = vector.extract_strided_slice %2 {offsets = [3, 0], sizes = [1, 256], strides = [1, 1]} : vector<9x256xf32> to vector<1x256xf32>
    %17 = vector.broadcast %16 : vector<1x256xf32> to vector<8x256xf32>
    %18 = arith.mulf %15, %17 : vector<8x256xf32>
    %c255_i32 = arith.constant 255 : i32
    %19 = tpu.dynamic_rotate %1 by %c255_i32 dim 1 : vector<8x256xf32>, i32 -> vector<8x256xf32>
    %20 = vector.extract_strided_slice %2 {offsets = [5, 0], sizes = [1, 256], strides = [1, 1]} : vector<9x256xf32> to vector<1x256xf32>
    %21 = vector.broadcast %20 : vector<1x256xf32> to vector<8x256xf32>
    %22 = arith.mulf %19, %21 : vector<8x256xf32>
    %c241_i32 = arith.constant 241 : i32
    %23 = tpu.dynamic_rotate %1 by %c241_i32 dim 1 : vector<8x256xf32>, i32 -> vector<8x256xf32>
    %24 = vector.extract_strided_slice %2 {offsets = [6, 0], sizes = [1, 256], strides = [1, 1]} : vector<9x256xf32> to vector<1x256xf32>
    %25 = vector.broadcast %24 : vector<1x256xf32> to vector<8x256xf32>
    %26 = arith.mulf %23, %25 : vector<8x256xf32>
    %c240_i32 = arith.constant 240 : i32
    %27 = tpu.dynamic_rotate %1 by %c240_i32 dim 1 : vector<8x256xf32>, i32 -> vector<8x256xf32>
    %28 = vector.extract_strided_slice %2 {offsets = [7, 0], sizes = [1, 256], strides = [1, 1]} : vector<9x256xf32> to vector<1x256xf32>
    %29 = vector.broadcast %28 : vector<1x256xf32> to vector<8x256xf32>
    %30 = arith.mulf %27, %29 : vector<8x256xf32>
    %c239_i32 = arith.constant 239 : i32
    %31 = tpu.dynamic_rotate %1 by %c239_i32 dim 1 : vector<8x256xf32>, i32 -> vector<8x256xf32>
    %32 = vector.extract_strided_slice %2 {offsets = [8, 0], sizes = [1, 256], strides = [1, 1]} : vector<9x256xf32> to vector<1x256xf32>
    %33 = vector.broadcast %32 : vector<1x256xf32> to vector<8x256xf32>
    %34 = arith.mulf %31, %33 : vector<8x256xf32>
    %35 = tpu.concatenate %6, %10, %14, %18, %1, %22, %26, %30, %34 in 0 : vector<8x256xf32>, vector<8x256xf32>, vector<8x256xf32>, vector<8x256xf32>, vector<8x256xf32>, vector<8x256xf32>, vector<8x256xf32>, vector<8x256xf32>, vector<8x256xf32> -> vector<72x256xf32>
    %36 = arith.truncf %35 : vector<72x256xf32> to vector<72x256xbf16>
    %c0_4 = arith.constant 0 : index
    %c0_5 = arith.constant 0 : index
    %37 = vector.load %arg2[%c0_4, %c0_5] : memref<96x72xbf16, #tpu.memory_space<vmem>>, vector<96x72xbf16>
    %cst = arith.constant dense<0.000000e+00> : vector<96x256xf32>
    %38 = tpu.matmul %37, %36, %cst {dimension_numbers = #tpu.dot_dimension_numbers<[1], [0], [0], [1], [0, 0, 1, 1], [], []>} : vector<96x72xbf16>, vector<72x256xbf16>, vector<96x256xf32> -> vector<96x256xf32>
    %cst_6 = arith.constant 0.000000e+00 : f32
    %39 = vector.broadcast %cst_6 : f32 to vector<96x256xf32>
    %40 = arith.maximumf %38, %39 : vector<96x256xf32>
    %c0_7 = arith.constant 0 : index
    %c0_8 = arith.constant 0 : index
    %41 = vector.load %arg4[%c0_7, %c0_8] : memref<8x96xf32, #tpu.memory_space<vmem>>, vector<8x96xf32>
    %cst_9 = arith.constant dense<0.000000e+00> : vector<8x256xf32>
    %42 = tpu.matmul %41, %40, %cst_9 {dimension_numbers = #tpu.dot_dimension_numbers<[1], [0], [0], [1], [0, 0, 1, 1], [], []>} : vector<8x96xf32>, vector<96x256xf32>, vector<8x256xf32> -> vector<8x256xf32>
    %c0_10 = arith.constant 0 : index
    %c0_11 = arith.constant 0 : index
    %43 = vector.load %arg5[%c0_10, %c0_11] : memref<8x1xf32, #tpu.memory_space<vmem>>, vector<8x1xf32>
    %44 = vector.broadcast %43 : vector<8x1xf32> to vector<8x256xf32>
    %45 = arith.addf %42, %44 : vector<8x256xf32>
    %c0_12 = arith.constant 0 : index
    %c0_13 = arith.constant 0 : index
    %c0_14 = arith.constant 0 : index
    %46 = vector.load %arg6[%c0_12, %c0_13, %c0_14] : memref<1x8x256xf32, #tpu.memory_space<vmem>>, vector<1x8x256xf32>
    %47 = vector.shape_cast %46 : vector<1x8x256xf32> to vector<8x256xf32>
    %48 = vector.shape_cast %45 : vector<8x256xf32> to vector<1x8x256xf32>
    tpu.vector_store %arg6[%c0_12, %c0_13, %c0_14], %48 {strides = array<i32>} : memref<1x8x256xf32, #tpu.memory_space<vmem>>, vector<1x8x256xf32>,
    return
  }
  func.func @transform_0(%arg0: i32) -> (i32, i32, i32) {
    %c0_i32 = arith.constant 0 : i32
    %c0_i32_0 = arith.constant 0 : i32
    %c0_i32_1 = arith.constant 0 : i32
    return %arg0, %c0_i32, %c0_i32_0 : i32, i32, i32
  }
  func.func @transform_1(%arg0: i32) -> (i32, i32) {
    %c0_i32 = arith.constant 0 : i32
    %c0_i32_0 = arith.constant 0 : i32
    %c0_i32_1 = arith.constant 0 : i32
    return %c0_i32, %c0_i32_0 : i32, i32
  }
  func.func @transform_2(%arg0: i32) -> (i32, i32) {
    %c0_i32 = arith.constant 0 : i32
    %c0_i32_0 = arith.constant 0 : i32
    %c0_i32_1 = arith.constant 0 : i32
    return %c0_i32, %c0_i32_0 : i32, i32
  }
  func.func @transform_3(%arg0: i32) -> (i32, i32) {
    %c0_i32 = arith.constant 0 : i32
    %c0_i32_0 = arith.constant 0 : i32
    %c0_i32_1 = arith.constant 0 : i32
    return %c0_i32, %c0_i32_0 : i32, i32
  }
  func.func @transform_4(%arg0: i32) -> (i32, i32) {
    %c0_i32 = arith.constant 0 : i32
    %c0_i32_0 = arith.constant 0 : i32
    %c0_i32_1 = arith.constant 0 : i32
    return %c0_i32, %c0_i32_0 : i32, i32
  }
  func.func @transform_5(%arg0: i32) -> (i32, i32, i32) {
    %c0_i32 = arith.constant 0 : i32
    %c0_i32_0 = arith.constant 0 : i32
    %c0_i32_1 = arith.constant 0 : i32
    return %arg0, %c0_i32, %c0_i32_0 : i32, i32, i32
  }
}

</mosaic_0001>

<llo_original>
// kernel: map_heatmap_forward.1
$region0: #{map_heatmap_forward.1}
  #allocation0 [shape = 'u32[]', space=smem, size = 0x4, offset = 0x4, fixed_abs, tag = 'smem constant byte address 0x4 - core index']
  #allocation1 [shape = 'u32[144,128]{1,0:T(1,128)}', space=vmem, size = 0x12000, scoped, tag = 'internal scratch']
  %s0 = inlined_call_operand.vmem [shape: f32[2,8,256], index: 0, kind: input, shape index: {}]
  %s1 = inlined_call_operand.vmem [shape: bf16[96,72], index: 1, kind: input, shape index: {}]
  %s2 = inlined_call_operand.vmem [shape: f32[9,256], index: 2, kind: input, shape index: {}]
  %s3 = inlined_call_operand.vmem [shape: f32[8,96], index: 3, kind: input, shape index: {}]
  %s4 = inlined_call_operand.vmem [shape: f32[8,1], index: 4, kind: input, shape index: {}]
  %s5 = inlined_call_operand.vmem [shape: f32[2,8,256], index: 5, kind: output, shape index: {}]
  %s6 = sld [smem:[#allocation0]]
  $region53: #{map_heatmap_forward.1} parent=0
    _
  %s8 = ssub.s32 1, %s6
  %s9 = scalar_select 0, %s8, %s6
  loop: start=0, step=1, limit=4
  $region2: #{map_heatmap_forward.1} parent=0 // loop_pre_header
    _
  $region3: #{map_heatmap_forward.1} parent=0 // loop_header
    %s11 = sphi 0, %s15
    %p12 = scmp.ge.s32.totalorder %s11, 4
    %s21 = sphi 0, %s23
    %s24 = sphi 0, %s21
    %s25 = sphi 0, %s24
    %s41 = sphi 0, %s25
    %s45 = sphi 0, %s45
    %s47 = sphi 0, %s45
    %s48 = sphi 0, %s47
    %s62 = sphi 0, %s48
    %s66 = sphi 0, %s66
    %s68 = sphi 0, %s66
    %s69 = sphi 0, %s68
    %s83 = sphi 0, %s69
    %s87 = sphi 0, %s87
    %s89 = sphi 0, %s87
    %s90 = sphi 0, %s89
    %s104 = sphi 0, %s90
    %s108 = sphi 0, %s108
    %s110 = sphi 0, %s108
    %s111 = sphi 0, %s110
    %s125 = sphi 0, %s111
    %s131 = sphi 0, %s133
    %s134 = sphi 0, %s131
    %s135 = sphi 0, %s134
    %s151 = sphi 0, %s135
  $region4: #{map_heatmap_forward.1} parent=0 // loop_header_branch
    %14 = sbr.rel (%p12) target = $region8
  $region5: #{map_heatmap_forward.1} parent=0 // loop_body
    %s16 = ssub.s32 %s11, 1
    %s17 = ssub.s32 %s11, 2
    %s18 = sadd.s32 %s11, 1
    %s19 = ssub.s32 %s11, %s18
    %p20 = scmp.eq.s32.totalorder %s19, 0
    %s22 = sadd.s32 %s21, 1
    %s23 = scalar_select %p20, %s21, %s22
    %p26 = pneg %p20
    %p27 = scmp.eq.s32.totalorder %s11, 1
    %p28 = por %p26, %p27
    %p29 = scmp.ne.s32.totalorder %s21, %s24
    %p30 = scmp.eq.s32.totalorder %s11, 0
    %p31 = por %p29, %p30
    %p32 = scmp.ne.s32.totalorder %s21, %s24
    %p33 = scmp.eq.s32.totalorder %s16, 1
    %p34 = por %p32, %p33
    %p35 = scmp.ne.s32.totalorder %s24, %s25
    %p36 = scmp.eq.s32.totalorder %s16, 0
    %p37 = por %p35, %p36
    %p38 = scmp.ne.s32.totalorder %s24, %s25
    %p39 = scmp.eq.s32.totalorder %s17, 1
    %p40 = por %p38, %p39
    %p42 = scmp.ne.s32.totalorder %s25, %s41
    %p43 = scmp.eq.s32.totalorder %s17, 0
    %p44 = por %p42, %p43
    %s46 = sadd.s32 %s45, 1
    %p49 = scmp.eq.s32.totalorder %s11, 1
    %p50 = scmp.ne.s32.totalorder %s45, %s47
    %p51 = scmp.eq.s32.totalorder %s11, 0
    %p52 = por %p50, %p51
    %p53 = scmp.ne.s32.totalorder %s45, %s47
    %p54 = scmp.eq.s32.totalorder %s16, 1
    %p55 = por %p53, %p54
    %p56 = scmp.ne.s32.totalorder %s47, %s48
    %p57 = scmp.eq.s32.totalorder %s16, 0
    %p58 = por %p56, %p57
    %p59 = scmp.ne.s32.totalorder %s47, %s48
    %p60 = scmp.eq.s32.totalorder %s17, 1
    %p61 = por %p59, %p60
    %p63 = scmp.ne.s32.totalorder %s48, %s62
    %p64 = scmp.eq.s32.totalorder %s17, 0
    %p65 = por %p63, %p64
    %s67 = sadd.s32 %s66, 1
    %p70 = scmp.eq.s32.totalorder %s11, 1
    %p71 = scmp.ne.s32.totalorder %s66, %s68
    %p72 = scmp.eq.s32.totalorder %s11, 0
    %p73 = por %p71, %p72
    %p74 = scmp.ne.s32.totalorder %s66, %s68
    %p75 = scmp.eq.s32.totalorder %s16, 1
    %p76 = por %p74, %p75
    %p77 = scmp.ne.s32.totalorder %s68, %s69
    %p78 = scmp.eq.s32.totalorder %s16, 0
    %p79 = por %p77, %p78
    %p80 = scmp.ne.s32.totalorder %s68, %s69
    %p81 = scmp.eq.s32.totalorder %s17, 1
    %p82 = por %p80, %p81
    %p84 = scmp.ne.s32.totalorder %s69, %s83
    %p85 = scmp.eq.s32.totalorder %s17, 0
    %p86 = por %p84, %p85
    %s88 = sadd.s32 %s87, 1
    %p91 = scmp.eq.s32.totalorder %s11, 1
    %p92 = scmp.ne.s32.totalorder %s87, %s89
    %p93 = scmp.eq.s32.totalorder %s11, 0
    %p94 = por %p92, %p93
    %p95 = scmp.ne.s32.totalorder %s87, %s89
    %p96 = scmp.eq.s32.totalorder %s16, 1
    %p97 = por %p95, %p96
    %p98 = scmp.ne.s32.totalorder %s89, %s90
    %p99 = scmp.eq.s32.totalorder %s16, 0
    %p100 = por %p98, %p99
    %p101 = scmp.ne.s32.totalorder %s89, %s90
    %p102 = scmp.eq.s32.totalorder %s17, 1
    %p103 = por %p101, %p102
    %p105 = scmp.ne.s32.totalorder %s90, %s104
    %p106 = scmp.eq.s32.totalorder %s17, 0
    %p107 = por %p105, %p106
    %s109 = sadd.s32 %s108, 1
    %p112 = scmp.eq.s32.totalorder %s11, 1
    %p113 = scmp.ne.s32.totalorder %s108, %s110
    %p114 = scmp.eq.s32.totalorder %s11, 0
    %p115 = por %p113, %p114
    %p116 = scmp.ne.s32.totalorder %s108, %s110
    %p117 = scmp.eq.s32.totalorder %s16, 1
    %p118 = por %p116, %p117
    %p119 = scmp.ne.s32.totalorder %s110, %s111
    %p120 = scmp.eq.s32.totalorder %s16, 0
    %p121 = por %p119, %p120
    %p122 = scmp.ne.s32.totalorder %s110, %s111
    %p123 = scmp.eq.s32.totalorder %s17, 1
    %p124 = por %p122, %p123
    %p126 = scmp.ne.s32.totalorder %s111, %s125
    %p127 = scmp.eq.s32.totalorder %s17, 0
    %p128 = por %p126, %p127
    %s129 = ssub.s32 %s11, %s18
    %p130 = scmp.eq.s32.totalorder %s129, 0
    %s132 = sadd.s32 %s131, 1
    %s133 = scalar_select %p130, %s131, %s132
    %p136 = pneg %p130
    %p137 = scmp.eq.s32.totalorder %s11, 1
    %p138 = por %p136, %p137
    %p139 = scmp.ne.s32.totalorder %s131, %s134
    %p140 = scmp.eq.s32.totalorder %s11, 0
    %p141 = por %p139, %p140
    %p142 = scmp.ne.s32.totalorder %s131, %s134
    %p143 = scmp.eq.s32.totalorder %s16, 1
    %p144 = por %p142, %p143
    %p145 = scmp.ne.s32.totalorder %s134, %s135
    %p146 = scmp.eq.s32.totalorder %s16, 0
    %p147 = por %p145, %p146
    %p148 = scmp.ne.s32.totalorder %s134, %s135
    %p149 = scmp.eq.s32.totalorder %s17, 1
    %p150 = por %p148, %p149
    %p152 = scmp.ne.s32.totalorder %s135, %s151
    %p153 = scmp.eq.s32.totalorder %s17, 0
    %p154 = por %p152, %p153
    %p155 = scmp.le.s32.totalorder 1, %s11
    %p156 = scmp.lt.s32.totalorder %s11, 3
    %p157 = pnand %p155, %p156
    %p158 = pneg %p157
    // Predicated region
    $region9: #{map_heatmap_forward.1} parent=5 // pred_check
      _
    $region10: #{map_heatmap_forward.1} parent=5 // pred_check_branch
      %160 = sbr.rel (%p157) target = $region12
    $region11: #{map_heatmap_forward.1} parent=5 // pred_region
      %s161 = ssub.s32 %s11, 1
      // Predicated region
      $region13: #{map_heatmap_forward.1} parent=11 // pred_check
        %p162 = pneg %p58
      $region14: #{map_heatmap_forward.1} parent=11 // pred_check_branch
        %164 = sbr.rel (%p162) target = $region16
      $region15: #{map_heatmap_forward.1} parent=11 // pred_region
        _
      $region16: #{map_heatmap_forward.1} parent=11 // pred_fallthru
        _
      // Predicated region
      $region17: #{map_heatmap_forward.1} parent=11 // pred_check
        %p165 = pneg %p79
      $region18: #{map_heatmap_forward.1} parent=11 // pred_check_branch
        %167 = sbr.rel (%p165) target = $region20
      $region19: #{map_heatmap_forward.1} parent=11 // pred_region
        _
      $region20: #{map_heatmap_forward.1} parent=11 // pred_fallthru
        _
      // Predicated region
      $region21: #{map_heatmap_forward.1} parent=11 // pred_check
        %p168 = pneg %p100
      $region22: #{map_heatmap_forward.1} parent=11 // pred_check_branch
        %170 = sbr.rel (%p168) target = $region24
      $region23: #{map_heatmap_forward.1} parent=11 // pred_region
        _
      $region24: #{map_heatmap_forward.1} parent=11 // pred_fallthru
        _
      // Predicated region
      $region25: #{map_heatmap_forward.1} parent=11 // pred_check
        %p171 = pneg %p121
      $region26: #{map_heatmap_forward.1} parent=11 // pred_check_branch
        %173 = sbr.rel (%p171) target = $region28
      $region27: #{map_heatmap_forward.1} parent=11 // pred_region
        _
      $region28: #{map_heatmap_forward.1} parent=11 // pred_fallthru
        _
    $region12: #{map_heatmap_forward.1} parent=5 // pred_fallthru
      _
    %p174 = scmp.lt.s32.totalorder %s11, 2
    // Predicated region
    $region29: #{map_heatmap_forward.1} parent=5 // pred_check
      %p175 = pneg %p174
    $region30: #{map_heatmap_forward.1} parent=5 // pred_check_branch
      %177 = sbr.rel (%p175) target = $region32
    $region31: #{map_heatmap_forward.1} parent=5 // pred_region
      // Predicated region
      $region33: #{map_heatmap_forward.1} parent=31 // pred_check
        %p178 = pneg %p31
      $region34: #{map_heatmap_forward.1} parent=31 // pred_check_branch
        %180 = sbr.rel (%p178) target = $region36
      $region35: #{map_heatmap_forward.1} parent=31 // pred_region
        %p181 = scmp.lt.s32.totalorder %s11, 1
        %s182 = scalar_select %p181, %s11, 1
        %s183 = smul.addr %s182, 2
        %s184 = smul.addr %s183, 8
        %s185 = scalar_lea.vmem %s0, %s184
      $region36: #{map_heatmap_forward.1} parent=31 // pred_fallthru
        _
    $region32: #{map_heatmap_forward.1} parent=5 // pred_fallthru
      _
    %p186 = scmp.le.s32.totalorder 1, %s11
    %p187 = scmp.lt.s32.totalorder %s11, 3
    %p188 = pnand %p186, %p187
    %p189 = pneg %p188
    // Predicated region
    $region37: #{map_heatmap_forward.1} parent=5 // pred_check
      _
    $region38: #{map_heatmap_forward.1} parent=5 // pred_check_branch
      %191 = sbr.rel (%p188) target = $region40
    $region39: #{map_heatmap_forward.1} parent=5 // pred_region
      %s192 = ssub.s32 %s11, 1
      %p193 = scmp.lt.s32.totalorder %s16, 1
      %s194 = scalar_select %p193, %s16, 1
      %s195 = smul.addr %s194, 2
      %s196 = smul.addr %s195, 8
      %s197 = scalar_lea.vmem %s0, %s196
      %p198 = pneg %p37
      %p199 = pneg %p34
      %p200 = pneg %p58
      %p201 = pneg %p55
      %p202 = pneg %p79
      %p203 = pneg %p76
      %p204 = pneg %p100
      %p205 = pneg %p97
      %p206 = pneg %p121
      %p207 = pneg %p118
      %p208 = pneg %p147
      %p209 = pneg %p144
      %p210 = scmp.lt.s32.totalorder %s16, 1
      %s211 = scalar_select %p210, %s16, 1
      %s212 = smul.addr %s211, 2
      %s213 = smul.addr %s212, 8
      %s214 = scalar_lea.vmem %s5, %s213
      %p215 = scmp.lt.s32.totalorder %s16, 1
      %s216 = scalar_select %p215, %s16, 1
      %s217 = smul.addr %s216, 2
      %s218 = smul.addr %s217, 8
      %s219 = scalar_lea.vmem %s0, %s218
      %p220 = scmp.lt.s32.totalorder %s16, 1
      %s221 = scalar_select %p220, %s16, 1
      %s222 = smul.addr %s221, 2
      %s223 = smul.addr %s222, 8
      %s224 = scalar_lea.vmem %s5, %s223
      %v226 = vld [vmem:[%s219] sm:$0xff]
      %v227 = vld [vmem:[%s219 + $0x8] sm:$0xff]
      %v228 = vld [vmem:[%s2] sm:$0xff]
      %v229 = vld [vmem:[%s2 + $0x8] sm:$0xff]
      %v230 = vld [vmem:[%s2 + $0x10] sm:$0x1]
      %v231 = vld [vmem:[%s2 + $0x18] sm:$0x1]
      %232 = vrot.lane.b32.xlu0 %v226, 17
      %v233 = vpop.permute.xlu0 %232
      %234 = vrot.lane.b32.xlu0 %v227, 17
      %v235 = vpop.permute.xlu0 %234
      %v236 = vlaneseq
      %v237 = vand.u32 %v236, 127
      %vm238 = vcmp.lt.s32.totalorder %v237, 17
      %v239 = vsel %vm238, %v233, %v235
      %v240 = vsel %vm238, %v235, %v233
      %v241 = vlaneseq
      %v242 = vshrl.u32 %v241, 7
      %v243 = vsub.s32 0, %v242
      %v244 = vrot.slane %v228, %v243
      %v245 = vlaneseq
      %v246 = vshrl.u32 %v245, 7
      %v247 = vsub.s32 0, %v246
      %v248 = vrot.slane %v229, %v247
      %v249 = vmul.f32 %v240, %v244
      %v250 = vmul.f32 %v239, %v248
      %251 = vrot.lane.b32.xlu0 %v226, 16
      %v252 = vpop.permute.xlu0 %251
      %253 = vrot.lane.b32.xlu0 %v227, 16
      %v254 = vpop.permute.xlu0 %253
      %vm255 = vcmp.lt.s32.totalorder %v237, 16
      %v256 = vsel %vm255, %v252, %v254
      %v257 = vsel %vm255, %v254, %v252
      %v258 = vlaneseq
      %v259 = vshrl.u32 %v258, 7
      %v260 = vsub.s32 1, %v259
      %v261 = vrot.slane %v228, %v260
      %v262 = vlaneseq
      %v263 = vshrl.u32 %v262, 7
      %v264 = vsub.s32 1, %v263
      %v265 = vrot.slane %v229, %v264
      %v266 = vmul.f32 %v257, %v261
      %v267 = vmul.f32 %v256, %v265
      %268 = vrot.lane.b32.xlu0 %v226, 15
      %v269 = vpop.permute.xlu0 %268
      %270 = vrot.lane.b32.xlu0 %v227, 15
      %v271 = vpop.permute.xlu0 %270
      %vm272 = vcmp.lt.s32.totalorder %v237, 15
      %v273 = vsel %vm272, %v269, %v271
      %v274 = vsel %vm272, %v271, %v269
      %v275 = vlaneseq
      %v276 = vshrl.u32 %v275, 7
      %v277 = vsub.s32 2, %v276
      %v278 = vrot.slane %v228, %v277
      %v279 = vlaneseq
      %v280 = vshrl.u32 %v279, 7
      %v281 = vsub.s32 2, %v280
      %v282 = vrot.slane %v229, %v281
      %v283 = vmul.f32 %v274, %v278
      %v284 = vmul.f32 %v273, %v282
      %285 = vrot.lane.b32.xlu0 %v226, 1
      %v286 = vpop.permute.xlu0 %285
      %287 = vrot.lane.b32.xlu0 %v227, 1
      %v288 = vpop.permute.xlu0 %287
      %vm289 = vcmp.lt.s32.totalorder %v237, 1
      %v290 = vsel %vm289, %v286, %v288
      %v291 = vsel %vm289, %v288, %v286
      %v292 = vlaneseq
      %v293 = vshrl.u32 %v292, 7
      %v294 = vsub.s32 3, %v293
      %v295 = vrot.slane %v228, %v294
      %v296 = vlaneseq
      %v297 = vshrl.u32 %v296, 7
      %v298 = vsub.s32 3, %v297
      %v299 = vrot.slane %v229, %v298
      %v300 = vmul.f32 %v291, %v295
      %v301 = vmul.f32 %v290, %v299
      %302 = vrot.lane.b32.xlu0 %v226, 127
      %v303 = vpop.permute.xlu0 %302
      %304 = vrot.lane.b32.xlu0 %v227, 127
      %v305 = vpop.permute.xlu0 %304
      %vm306 = vcmp.lt.s32.totalorder %v237, 127
      %v307 = vsel %vm306, %v303, %v305
      %v308 = vsel %vm306, %v305, %v303
      %v309 = vlaneseq
      %v310 = vshrl.u32 %v309, 7
      %v311 = vsub.s32 5, %v310
      %v312 = vrot.slane %v228, %v311
      %v313 = vlaneseq
      %v314 = vshrl.u32 %v313, 7
      %v315 = vsub.s32 5, %v314
      %v316 = vrot.slane %v229, %v315
      %v317 = vmul.f32 %v307, %v312
      %v318 = vmul.f32 %v308, %v316
      %319 = vrot.lane.b32.xlu0 %v226, 113
      %v320 = vpop.permute.xlu0 %319
      %321 = vrot.lane.b32.xlu0 %v227, 113
      %v322 = vpop.permute.xlu0 %321
      %vm323 = vcmp.lt.s32.totalorder %v237, 113
      %v324 = vsel %vm323, %v320, %v322
      %v325 = vsel %vm323, %v322, %v320
      %v326 = vlaneseq
      %v327 = vshrl.u32 %v326, 7
      %v328 = vsub.s32 6, %v327
      %v329 = vrot.slane %v228, %v328
      %v330 = vlaneseq
      %v331 = vshrl.u32 %v330, 7
      %v332 = vsub.s32 6, %v331
      %v333 = vrot.slane %v229, %v332
      %v334 = vmul.f32 %v324, %v329
      %v335 = vmul.f32 %v325, %v333
      %336 = vrot.lane.b32.xlu0 %v226, 112
      %v337 = vpop.permute.xlu0 %336
      %338 = vrot.lane.b32.xlu0 %v227, 112
      %v339 = vpop.permute.xlu0 %338
      %vm340 = vcmp.lt.s32.totalorder %v237, 112
      %v341 = vsel %vm340, %v337, %v339
      %v342 = vsel %vm340, %v339, %v337
      %v343 = vlaneseq
      %v344 = vshrl.u32 %v343, 7
      %v345 = vsub.s32 7, %v344
      %v346 = vrot.slane %v228, %v345
      %v347 = vlaneseq
      %v348 = vshrl.u32 %v347, 7
      %v349 = vsub.s32 7, %v348
      %v350 = vrot.slane %v229, %v349
      %v351 = vmul.f32 %v341, %v346
      %v352 = vmul.f32 %v342, %v350
      %353 = vrot.lane.b32.xlu0 %v226, 111
      %v354 = vpop.permute.xlu0 %353
      %355 = vrot.lane.b32.xlu0 %v227, 111
      %v356 = vpop.permute.xlu0 %355
      %vm357 = vcmp.lt.s32.totalorder %v237, 111
      %v358 = vsel %vm357, %v354, %v356
      %v359 = vsel %vm357, %v356, %v354
      %v360 = vlaneseq
      %v361 = vshrl.u32 %v360, 7
      %v362 = vsub.s32 0, %v361
      %v363 = vrot.slane %v230, %v362
      %v364 = vlaneseq
      %v365 = vshrl.u32 %v364, 7
      %v366 = vsub.s32 0, %v365
      %v367 = vrot.slane %v231, %v366
      %v368 = vmul.f32 %v358, %v363
      %v369 = vmul.f32 %v359, %v367
      %v370 = vpack.c.bf16 %v266, %v249
      %v371 = vpack.c.bf16 %v267, %v250
      %v372 = vpack.c.bf16 %v300, %v283
      %v373 = vpack.c.bf16 %v301, %v284
      %v374 = vpack.c.bf16 %v317, %v226
      %v375 = vpack.c.bf16 %v318, %v227
      %v376 = vpack.c.bf16 %v351, %v334
      %v377 = vpack.c.bf16 %v352, %v335
      %v378 = vpack.c.bf16 %v368, %v368
      %v379 = vpack.c.bf16 %v369, %v369
      %v380 = vld [vmem:[%s1] sm:$0xf]
      %v381 = vld [vmem:[%s1 + $0x4] sm:$0xf]
      %v382 = vld [vmem:[%s1 + $0x8] sm:$0xf]
      %v383 = vld [vmem:[%s1 + $0xc] sm:$0xf]
      %v384 = vld [vmem:[%s1 + $0x10] sm:$0xf]
      %v385 = vld [vmem:[%s1 + $0x14] sm:$0xf]
      %v386 = vld [vmem:[%s1 + $0x18] sm:$0xf]
      %v387 = vld [vmem:[%s1 + $0x1c] sm:$0xf]
      %v388 = vld [vmem:[%s1 + $0x20] sm:$0xf]
      %v389 = vld [vmem:[%s1 + $0x24] sm:$0xf]
      %v390 = vld [vmem:[%s1 + $0x28] sm:$0xf]
      %v391 = vld [vmem:[%s1 + $0x2c] sm:$0xf]
      %v404 = vunpack.c.l.b16 %v380
      %v405 = vunpack.c.l.b16 %v381
      %v406 = vunpack.c.l.b16 %v382
      %v407 = vunpack.c.l.b16 %v383
      %v408 = vunpack.c.l.b16 %v384
      %v409 = vunpack.c.l.b16 %v385
      %v410 = vunpack.c.l.b16 %v386
      %v411 = vunpack.c.l.b16 %v387
      %v412 = vunpack.c.l.b16 %v388
      %v413 = vunpack.c.l.b16 %v389
      %v414 = vunpack.c.l.b16 %v390
      %v415 = vunpack.c.l.b16 %v391
      %v416 = vpack.c.b16 %v405, %v404
      %v417 = vpack.c.b16 %v407, %v406
      %v418 = vpack.c.b16 %v409, %v408
      %v419 = vpack.c.b16 %v411, %v410
      %v420 = vpack.c.b16 %v413, %v412
      %v421 = vpack.c.b16 %v415, %v414
      %vm422 = vcmask 588800
      %v424 = vsel %vm422, %v416, 0
      %v427 = vsel %vm422, %v417, 0
      %v430 = vsel %vm422, %v418, 0
      %v433 = vsel %vm422, %v419, 0
      %v436 = vsel %vm422, %v420, 0
      %v439 = vsel %vm422, %v421, 0
      %vm441 = vcmask 1043456
      %v443 = vsel %vm441, %v378, 0
      %v446 = vsel %vm441, %v379, 0
      %448 = vmatprep.subr.bf16.mxu0 0
      %449 = vmatpush1.bf16.msra.mxu0 0
      %450 = vmatprep.subr.bf16.mxu0 0
      %451 = vmatpush1.bf16.msra.mxu0 0
      %452 = vmatprep.subr.bf16.mxu0 0
      %453 = vmatpush1.bf16.msra.mxu0 0
      %454 = vmatprep.subr.bf16.mxu0 %v446
      %455 = vmatpush1.bf16.msra.mxu0 %v443
      %456 = vmatprep.subr.bf16.mxu0 %v377
      %457 = vmatpush1.bf16.msra.mxu0 %v376
      %458 = vmatprep.subr.bf16.mxu0 %v375
      %459 = vmatpush1.bf16.msra.mxu0 %v374
      %460 = vmatprep.subr.bf16.mxu0 %v373
      %461 = vmatpush1.bf16.msra.mxu0 %v372
      %462 = vmatprep.subr.bf16.mxu0 %v371
      %463 = vmatpush1.bf16.msra.mxu0 %v370
      %464 = vmatprep.subr.bf16.mxu0 0
      %465 = vmatpush2.bf16.msra.mxu0 0
      %466 = vmatprep.subr.bf16.mxu0 0
      %467 = vmatpush2.bf16.msra.mxu0 0
      %468 = vmatprep.subr.bf16.mxu0 0
      %469 = vmatpush2.bf16.msra.mxu0 0
      %470 = vmatprep.subr.bf16.mxu0 0
      %471 = vmatpush2.bf16.msra.mxu0 0
      %472 = vmatprep.subr.bf16.mxu0 0
      %473 = vmatpush2.bf16.msra.mxu0 0
      %474 = vmatprep.subr.bf16.mxu0 0
      %475 = vmatpush2.bf16.msra.mxu0 0
      %476 = vmatprep.subr.bf16.mxu0 0
      %477 = vmatpush2.bf16.msra.mxu0 0
      %478 = vmatprep.subr.bf16.mxu0 0
      %479 = vmatpush2.bf16.msra.mxu0 0
      %480 = vmatprep.mubr.bf16.mxu0 0
      %481 = vmatmul.mubr.bf16.gmra.mxu0 %v424
      %v482 = vpop.f32.mrf.mxu0
      %v483 = vadd.f32 0.0, %v482
      %v484 = vpop.f32.mrf.mxu0
      %v485 = vadd.f32 0.0, %v484
      %v486 = vpop.f32.mrf.mxu0
      %v487 = vadd.f32 0.0, %v486
      %v488 = vpop.f32.mrf.mxu0
      %v489 = vadd.f32 0.0, %v488
      %490 = vmatprep.mubr.bf16.mxu0 0
      %491 = vmatmul.mubr.bf16.gmra.mxu0 %v427
      %v492 = vpop.f32.mrf.mxu0
      %v493 = vadd.f32 0.0, %v492
      %v494 = vpop.f32.mrf.mxu0
      %v495 = vadd.f32 0.0, %v494
      %v496 = vpop.f32.mrf.mxu0
      %v497 = vadd.f32 0.0, %v496
      %v498 = vpop.f32.mrf.mxu0
      %v499 = vadd.f32 0.0, %v498
      %500 = vmatprep.mubr.bf16.mxu0 0
      %501 = vmatmul.mubr.bf16.gmra.mxu0 %v430
      %v502 = vpop.f32.mrf.mxu0
      %v503 = vadd.f32 0.0, %v502
      %v504 = vpop.f32.mrf.mxu0
      %v505 = vadd.f32 0.0, %v504
      %v506 = vpop.f32.mrf.mxu0
      %v507 = vadd.f32 0.0, %v506
      %v508 = vpop.f32.mrf.mxu0
      %v509 = vadd.f32 0.0, %v508
      %510 = vmatprep.mubr.bf16.mxu0 0
      %511 = vmatmul.mubr.bf16.gmra.mxu0 %v433
      %v512 = vpop.f32.mrf.mxu0
      %v513 = vadd.f32 0.0, %v512
      %v514 = vpop.f32.mrf.mxu0
      %v515 = vadd.f32 0.0, %v514
      %v516 = vpop.f32.mrf.mxu0
      %v517 = vadd.f32 0.0, %v516
      %v518 = vpop.f32.mrf.mxu0
      %v519 = vadd.f32 0.0, %v518
      %520 = vmatprep.mubr.bf16.mxu0 0
      %521 = vmatmul.mubr.bf16.gmra.mxu0 %v436
      %v522 = vpop.f32.mrf.mxu0
      %v523 = vadd.f32 0.0, %v522
      %v524 = vpop.f32.mrf.mxu0
      %v525 = vadd.f32 0.0, %v524
      %v526 = vpop.f32.mrf.mxu0
      %v527 = vadd.f32 0.0, %v526
      %v528 = vpop.f32.mrf.mxu0
      %v529 = vadd.f32 0.0, %v528
      %530 = vmatprep.mubr.bf16.mxu0 0
      %531 = vmatmul.mubr.bf16.gmra.mxu0 %v439
      %v532 = vpop.f32.mrf.mxu0
      %v533 = vadd.f32 0.0, %v532
      %v534 = vpop.f32.mrf.mxu0
      %v535 = vadd.f32 0.0, %v534
      %v536 = vpop.f32.mrf.mxu0
      %v537 = vadd.f32 0.0, %v536
      %v538 = vpop.f32.mrf.mxu0
      %v539 = vadd.f32 0.0, %v538
      %540 = vdwg.mxu0
      %v541 = vmax.f32 %v483, 0.0
      %v542 = vmax.f32 %v485, 0.0
      %v543 = vmax.f32 %v487, 0.0
      %v544 = vmax.f32 %v489, 0.0
      %v545 = vmax.f32 %v493, 0.0
      %v546 = vmax.f32 %v495, 0.0
      %v547 = vmax.f32 %v497, 0.0
      %v548 = vmax.f32 %v499, 0.0
      %v549 = vmax.f32 %v503, 0.0
      %v550 = vmax.f32 %v505, 0.0
      %v551 = vmax.f32 %v507, 0.0
      %v552 = vmax.f32 %v509, 0.0
      %v553 = vmax.f32 %v513, 0.0
      %v554 = vmax.f32 %v515, 0.0
      %v555 = vmax.f32 %v517, 0.0
      %v556 = vmax.f32 %v519, 0.0
      %v557 = vmax.f32 %v523, 0.0
      %v558 = vmax.f32 %v525, 0.0
      %v559 = vmax.f32 %v527, 0.0
      %v560 = vmax.f32 %v529, 0.0
      %v561 = vmax.f32 %v533, 0.0
      %v562 = vmax.f32 %v535, 0.0
      %v563 = vmax.f32 %v537, 0.0
      %v564 = vmax.f32 %v539, 0.0
      %v565 = vld [vmem:[%s3] sm:$0xff]
      %v566 = vld [vmem:[%s4] sm:$0xff]
      %568 = vset.pattern.permute.xlu0 0
      %569 = vperm.xlu0 %568, %v566
      %v570 = vpop.permute.xlu0 %569
      %vm572 = vcmask 785408
      %v574 = vsel %vm572, %v565, 0
      %576 = vmatprep.subr.mxu0 0.0
      %577 = vmatpush1.msra.mxu0 0.0
      %578 = vmatprep.subr.mxu0 0.0
      %579 = vmatpush1.msra.mxu0 0.0
      %580 = vmatprep.subr.mxu0 0.0
      %581 = vmatpush1.msra.mxu0 0.0
      %582 = vmatprep.subr.mxu0 0.0
      %583 = vmatpush1.msra.mxu0 0.0
      %584 = vmatprep.subr.mxu0 %v564
      %585 = vmatpush1.msra.mxu0 %v563
      %586 = vmatprep.subr.mxu0 %v562
      %587 = vmatpush1.msra.mxu0 %v561
      %588 = vmatprep.subr.mxu0 %v560
      %589 = vmatpush1.msra.mxu0 %v559
      %590 = vmatprep.subr.mxu0 %v558
      %591 = vmatpush1.msra.mxu0 %v557
      %592 = vmatprep.subr.mxu0 %v556
      %593 = vmatpush1.msra.mxu0 %v555
      %594 = vmatprep.subr.mxu0 %v554
      %595 = vmatpush1.msra.mxu0 %v553
      %596 = vmatprep.subr.mxu0 %v552
      %597 = vmatpush1.msra.mxu0 %v551
      %598 = vmatprep.subr.mxu0 %v550
      %599 = vmatpush1.msra.mxu0 %v549
      %600 = vmatprep.subr.mxu0 %v548
      %601 = vmatpush1.msra.mxu0 %v547
      %602 = vmatprep.subr.mxu0 %v546
      %603 = vmatpush1.msra.mxu0 %v545
      %604 = vmatprep.subr.mxu0 %v544
      %605 = vmatpush1.msra.mxu0 %v543
      %606 = vmatprep.subr.mxu0 %v542
      %607 = vmatpush1.msra.mxu0 %v541
      %608 = vmatprep.subr.mxu0 0.0
      %609 = vmatpush2.msra.mxu0 0.0
      %610 = vmatprep.subr.mxu0 0.0
      %611 = vmatpush2.msra.mxu0 0.0
      %612 = vmatprep.subr.mxu0 0.0
      %613 = vmatpush2.msra.mxu0 0.0
      %614 = vmatprep.subr.mxu0 0.0
      %615 = vmatpush2.msra.mxu0 0.0
      %616 = vmatprep.subr.mxu0 0.0
      %617 = vmatpush2.msra.mxu0 0.0
      %618 = vmatprep.subr.mxu0 0.0
      %619 = vmatpush2.msra.mxu0 0.0
      %620 = vmatprep.subr.mxu0 0.0
      %621 = vmatpush2.msra.mxu0 0.0
      %622 = vmatprep.subr.mxu0 0.0
      %623 = vmatpush2.msra.mxu0 0.0
      %624 = vmatprep.subr.mxu0 0.0
      %625 = vmatpush2.msra.mxu0 0.0
      %626 = vmatprep.subr.mxu0 0.0
      %627 = vmatpush2.msra.mxu0 0.0
      %628 = vmatprep.subr.mxu0 0.0
      %629 = vmatpush2.msra.mxu0 0.0
      %630 = vmatprep.subr.mxu0 0.0
      %631 = vmatpush2.msra.mxu0 0.0
      %632 = vmatprep.subr.mxu0 0.0
      %633 = vmatpush2.msra.mxu0 0.0
      %634 = vmatprep.subr.mxu0 0.0
      %635 = vmatpush2.msra.mxu0 0.0
      %636 = vmatprep.subr.mxu0 0.0
      %637 = vmatpush2.msra.mxu0 0.0
      %638 = vmatprep.subr.mxu0 0.0
      %639 = vmatpush2.msra.mxu0 0.0
      %640 = vmatprep.mubr.f32.mxu0 0.0
      %641 = vmatmul.mubr.f32.gmra.mxu0 %v574
      %v642 = vpop.f32.mrf.mxu0
      %v643 = vadd.f32 %v570, %v642
      %v644 = vpop.f32.mrf.mxu0
      %v645 = vadd.f32 %v570, %v644
      %646 = vdwg.mxu0
      %647 = vst [vmem:[%s224] sm:$0xff] %v643
      %648 = vst [vmem:[%s224 + $0x8] sm:$0xff] %v645
      %p649 = scmp.lt.s32.totalorder %s16, 1
      %s650 = scalar_select %p649, %s16, 1
      %s651 = smul.addr %s650, 2
      %s652 = smul.addr %s651, 8
      %s653 = scalar_lea.vmem %s5, %s652
      // Predicated region
      $region41: #{map_heatmap_forward.1} parent=39 // pred_check
        %p654 = pneg %p144
      $region42: #{map_heatmap_forward.1} parent=39 // pred_check_branch
        %656 = sbr.rel (%p654) target = $region44
      $region43: #{map_heatmap_forward.1} parent=39 // pred_region
        _
      $region44: #{map_heatmap_forward.1} parent=39 // pred_fallthru
        _
    $region40: #{map_heatmap_forward.1} parent=5 // pred_fallthru
      _
    %p657 = scmp.le.s32.totalorder 2, %s11
    // Predicated region
    $region45: #{map_heatmap_forward.1} parent=5 // pred_check
      %p658 = pneg %p657
    $region46: #{map_heatmap_forward.1} parent=5 // pred_check_branch
      %660 = sbr.rel (%p658) target = $region48
    $region47: #{map_heatmap_forward.1} parent=5 // pred_region
      %s661 = ssub.s32 %s11, 2
      // Predicated region
      $region49: #{map_heatmap_forward.1} parent=47 // pred_check
        %p662 = pneg %p150
      $region50: #{map_heatmap_forward.1} parent=47 // pred_check_branch
        %664 = sbr.rel (%p662) target = $region52
      $region51: #{map_heatmap_forward.1} parent=47 // pred_region
        %p665 = scmp.lt.s32.totalorder %s17, 1
        %s666 = scalar_select %p665, %s17, 1
        %s667 = smul.addr %s666, 2
        %s668 = smul.addr %s667, 8
        %s669 = scalar_lea.vmem %s5, %s668
      $region52: #{map_heatmap_forward.1} parent=47 // pred_fallthru
        _
    $region48: #{map_heatmap_forward.1} parent=5 // pred_fallthru
      _
  $region6: #{map_heatmap_forward.1} parent=0 // loop_footer
    %s15 = sadd.s32 1, %s11
  $region7: #{map_heatmap_forward.1} parent=0 // loop_footer_branch
    %10 = sbr.rel target = $region3
  $region8: #{map_heatmap_forward.1} parent=0 // loop_exit
    _

</llo_original>
